<compile_context>
chip_gen: v5e
topology: v5e:2x2
jax: 0.10.0
libtpu: 0.0.40
codegen_flags: <defaults>
</compile_context>

<pallas_src>
import jax
import jax.numpy as jnp
from jax.experimental import pallas as pl
from jax.experimental.pallas import tpu as pltpu


def _round_up(x: int, m: int) -> int:
    return (x + m - 1) // m * m


def _cdiv(a: int, b: int) -> int:
    return (a + b - 1) // b


def _patch_embed_kernel(x_ref, w_ref, b_ref, o_ref):
    # x_ref: (tm, K)   w_ref: (K, D_pad)   b_ref: (1, D_pad)   o_ref: (tm, D_pad)
    acc = jnp.dot(x_ref[...], w_ref[...], preferred_element_type=jnp.float32)  # MXU
    acc = acc + b_ref[...].astype(jnp.float32)
    o_ref[...] = acc.astype(o_ref.dtype)


def _choose_tiles(M: int, K: int, D_pad: int, *, tm_max: int,
                  vmem_budget_bytes: int = 20 * 1024 * 1024):
    """Pick (tm, n_m) with minimal M padding, >=2 steps when possible, VMEM-capped."""
    n_m = max(1, _cdiv(M, tm_max))
    if n_m == 1 and M >= 16:
        n_m = 2  # give both v7x TensorCores work; free on v5e/v6e (1 TC)
    tm = _round_up(_cdiv(M, n_m), 8)

    def footprint(tm_):
        # double-buffered x + out tiles, resident (possibly double-buffered) w + b;
        # conservatively assume 4 B/elem.
        return (2 * (tm_ * K + tm_ * D_pad) + 2 * (K * D_pad + D_pad)) * 4

    while footprint(tm) > vmem_budget_bytes and tm > 256:
        n_m *= 2
        tm = _round_up(_cdiv(M, n_m), 8)
    return tm, n_m


def prepare_patch_embedding_params(w, b, *, compute_dtype=None):
    """One-time parameter prep (hoisted out of the hot path).

    w: (t*b, d_model)  -- transpose of PyTorch nn.Linear weight.
    b: (d_model,)
    Returns (w_padded, b_padded_2d, d_model).
    """
    K, D = w.shape
    # Pad D only when it pays (D > 128); for tiny d_model, unpadded full-dim
    # blocks with masked stores beat two extra HBM pad/slice passes.
    D_pad = _round_up(D, 128) if D > 128 else D
    wp = jnp.pad(w, ((0, 0), (0, D_pad - D))) if D_pad != D else w
    bp = (jnp.pad(b, (0, D_pad - D)) if D_pad != D else b).reshape(1, D_pad)
    if compute_dtype is not None:
        wp = wp.astype(compute_dtype)  # halves weight HBM reads; bias stays f32
    return wp, bp, D


def patch_embedding_forward(x, wp, bp, d_model, *, compute_dtype=None,
                            out_dtype=None, tm_max=2048):
    """x: (bs, ps, ps, t, nb); wp/bp from prepare_patch_embedding_params."""
    bs, ps1, ps2, t, nb = x.shape
    M = bs * ps1 * ps2
    K = t * nb
    D_pad = wp.shape[1]
    assert wp.shape[0] == K
    out_dtype = jnp.dtype(out_dtype if out_dtype is not None else x.dtype)

    x2 = x.reshape(M, K)
    if compute_dtype is not None:
        x2 = x2.astype(compute_dtype)  # wrapper-side cast: halves activation DMA

    tm, n_m = _choose_tiles(M, K, D_pad, tm_max=tm_max)
    M_pad = tm * n_m
    if M_pad != M:
        x2 = jnp.pad(x2, ((0, M_pad - M), (0, 0)))  # rows only; no K pad

    cost = pl.CostEstimate(
        flops=2 * M * K * D_pad,
        transcendentals=0,
        bytes_accessed=(M_pad * K * x2.dtype.itemsize
                        + K * D_pad * wp.dtype.itemsize
                        + D_pad * bp.dtype.itemsize
                        + M_pad * D_pad * out_dtype.itemsize),
    )

    out = pl.pallas_call(
        _patch_embed_kernel,
        out_shape=jax.ShapeDtypeStruct((M_pad, D_pad), out_dtype),
        grid_spec=pltpu.PrefetchScalarGridSpec(
            num_scalar_prefetch=0,
            grid=(n_m,),
            in_specs=[
                pl.BlockSpec((tm, K), lambda i: (i, 0)),       # activation tiles
                pl.BlockSpec((K, D_pad), lambda i: (0, 0)),    # whole weight, resident
                pl.BlockSpec((1, D_pad), lambda i: (0, 0)),    # bias, resident
            ],
            out_specs=pl.BlockSpec((tm, D_pad), lambda i: (i, 0)),
        ),
        compiler_params=pltpu.CompilerParams(
            dimension_semantics=("parallel",)),
        cost_estimate=cost,
    )(x2, wp, bp)

    if M_pad != M or D_pad != d_model:
        out = out[:M, :d_model]
    return out.reshape(bs, ps1 * ps2, d_model)


def patch_embedding_reference(x, w, b):
    """Pure-JAX reference mirroring the PyTorch forward."""
    bs, ps1, ps2, t, nb = x.shape
    x2 = x.reshape(bs, ps1 * ps2, t * nb)
    return x2 @ w + b


if __name__ == "__main__":
    # Small shapes consistent with the module:
    # batch=2, patch-grid 4x4 (seq=16), num_temporal=8, num_band=4 -> in=32, d_model=32.
    bs, ps, t, nb, d_model = 2, 4, 8, 4, 32
    in_features = t * nb

    key = jax.random.PRNGKey(0)
    kx, kw, kb = jax.random.split(key, 3)
    x = jax.random.normal(kx, (bs, ps, ps, t, nb), dtype=jnp.float32)
    # PyTorch nn.Linear weight is (d_model, in_features); we store its transpose.
    w = jax.random.normal(kw, (in_features, d_model), dtype=jnp.float32) * (
        1.0 / in_features ** 0.5)
    b = 0.05 * jax.random.normal(kb, (d_model,), dtype=jnp.float32)

    y_ref = patch_embedding_reference(x, w, b)

    # f32 operand path (tight check).
    wp, bp, D = prepare_patch_embedding_params(w, b)
    y = jax.block_until_ready(patch_embedding_forward(x, wp, bp, D))
    assert y.shape == (bs, ps * ps, d_model), y.shape
    assert jnp.allclose(y, y_ref, atol=1e-4, rtol=1e-4), "mismatch vs reference"

    # bf16 operand path (wrapper-side cast, f32 accumulation), looser tolerance.
    wp16, bp16, D = prepare_patch_embedding_params(w, b, compute_dtype=jnp.bfloat16)
    y_bf16 = jax.block_until_ready(
        patch_embedding_forward(x, wp16, bp16, D, compute_dtype=jnp.bfloat16))
    assert y_bf16.shape == (bs, ps * ps, d_model), y_bf16.shape
    assert jnp.allclose(y_bf16, y_ref, atol=5e-2, rtol=5e-2), "bf16 path mismatch"

    print("KERNEL_OK")
</pallas_src>

<mosaic_0001>
module attributes {stable_mosaic.version = 11 : i64} {
  func.func @_patch_embed_kernel(%arg0: i32, %arg1: memref<16x32xf32, #tpu.memory_space<vmem>>, %arg2: memref<32x32xf32, #tpu.memory_space<vmem>>, %arg3: memref<1x32xf32, #tpu.memory_space<vmem>>, %arg4: memref<16x32xf32, #tpu.memory_space<vmem>>) attributes {dimension_semantics = [#tpu.dimension_semantics<parallel>], iteration_bounds = array<i64: 2>, scalar_prefetch = 0 : i64, scratch_operands = 0 : i64, tpu.core_type = #tpu.core_type<tc>, window_params = [{transform_indices = @transform_0, window_bounds = array<i64: 16, 32>}, {pipeline_mode = #tpu.pipeline_mode<synchronous>, transform_indices = @transform_1, window_bounds = array<i64: 32, 32>}, {pipeline_mode = #tpu.pipeline_mode<synchronous>, transform_indices = @transform_2, window_bounds = array<i64: 1, 32>}, {transform_indices = @transform_3, window_bounds = array<i64: 16, 32>}]} {
    %c0 = arith.constant 0 : index
    %c0_0 = arith.constant 0 : index
    %0 = vector.load %arg1[%c0, %c0_0] : memref<16x32xf32, #tpu.memory_space<vmem>>, vector<16x32xf32>
    %c0_1 = arith.constant 0 : index
    %c0_2 = arith.constant 0 : index
    %1 = vector.load %arg2[%c0_1, %c0_2] : memref<32x32xf32, #tpu.memory_space<vmem>>, vector<32x32xf32>
    %cst = arith.constant dense<0.000000e+00> : vector<16x32xf32>
    %2 = tpu.matmul %0, %1, %cst {dimension_numbers = #tpu.dot_dimension_numbers<[1], [0], [0], [1], [0, 0, 1, 1], [], []>} : vector<16x32xf32>, vector<32x32xf32>, vector<16x32xf32> -> vector<16x32xf32>
    %c0_3 = arith.constant 0 : index
    %c0_4 = arith.constant 0 : index
    %3 = vector.load %arg3[%c0_3, %c0_4] : memref<1x32xf32, #tpu.memory_space<vmem>>, vector<1x32xf32>
    %4 = vector.broadcast %3 : vector<1x32xf32> to vector<16x32xf32>
    %5 = arith.addf %2, %4 : vector<16x32xf32>
    %c0_5 = arith.constant 0 : index
    %c0_6 = arith.constant 0 : index
    %6 = vector.load %arg4[%c0_5, %c0_6] : memref<16x32xf32, #tpu.memory_space<vmem>>, vector<16x32xf32>
    tpu.vector_store %arg4[%c0_5, %c0_6], %5 {strides = array<i32>} : memref<16x32xf32, #tpu.memory_space<vmem>>, vector<16x32xf32>,
    return
  }
  func.func @transform_0(%arg0: i32) -> (i32, i32) {
    %c0_i32 = arith.constant 0 : i32
    %c0_i32_0 = arith.constant 0 : i32
    return %arg0, %c0_i32 : i32, i32
  }
  func.func @transform_1(%arg0: i32) -> (i32, i32) {
    %c0_i32 = arith.constant 0 : i32
    %c0_i32_0 = arith.constant 0 : i32
    %c0_i32_1 = arith.constant 0 : i32
    return %c0_i32, %c0_i32_0 : i32, i32
  }
  func.func @transform_2(%arg0: i32) -> (i32, i32) {
    %c0_i32 = arith.constant 0 : i32
    %c0_i32_0 = arith.constant 0 : i32
    %c0_i32_1 = arith.constant 0 : i32
    return %c0_i32, %c0_i32_0 : i32, i32
  }
  func.func @transform_3(%arg0: i32) -> (i32, i32) {
    %c0_i32 = arith.constant 0 : i32
    %c0_i32_0 = arith.constant 0 : i32
    return %arg0, %c0_i32 : i32, i32
  }
}

</mosaic_0001>

<llo_original>
// kernel: tpu_custom_call.1
$region0: #{tpu_custom_call.1}
  #allocation0 [shape = 'u32[]', space=smem, size = 0x4, offset = 0x4, fixed_abs, tag = 'smem constant byte address 0x4 - core index']
  #allocation1 [shape = 'u32[72,128]{1,0:T(1,128)}', space=vmem, size = 0x9000, scoped, tag = 'internal scratch']
  %s0 = inlined_call_operand.hbm [shape: f32[32,32], index: 0, kind: input, shape index: {}]
  %s1 = inlined_call_operand.hbm [shape: f32[32,32], index: 1, kind: input, shape index: {}]
  %s2 = inlined_call_operand.vmem [shape: f32[1,32], index: 2, kind: input, shape index: {}]
  %s3 = inlined_call_operand.hbm [shape: f32[32,32], index: 3, kind: output, shape index: {}]
  %s4 = sld [smem:[#allocation0]]
  $region53: #{tpu_custom_call.1} parent=0
    _
  %s6 = ssub.s32 1, %s4
  %s7 = scalar_select 0, %s6, %s4
  $region1: #{tpu_custom_call.1} parent=0
    #allocation2 [shape = 'u8[16384]{0}', space=vmem, size = 0x4000, scoped, tag = 'input window, operand 0']
    #allocation3 [shape = 's32[2]{0}', space=sflag, size = 0x8, scoped, tag = 'scoped memory for tpu_custom_call.1']
    #allocation4 [shape = 's32[2]{0}', space=sflag, size = 0x8, scoped, tag = 'scoped memory for tpu_custom_call.1']
    #allocation5 [shape = 'u8[16384]{0}', space=vmem, size = 0x4000, scoped, tag = 'input window, operand 1, single buffered']
    #allocation6 [shape = 's32[1]{0}', space=sflag, size = 0x4, scoped, tag = 'scoped memory for tpu_custom_call.1']
    #allocation7 [shape = 'u8[16384]{0}', space=vmem, size = 0x4000, scoped, tag = 'output window, operand 0']
    %8 = vsyncpa [#allocation3], 0
    %s9 = scalar_lea.sflag [#allocation3], 1
    %10 = vsyncpa %s9, 0
    %11 = vsyncpa [#allocation6], 0
    %12 = vsyncpa [#allocation4], 0
    %s13 = scalar_lea.sflag [#allocation4], 1
    %14 = vsyncpa %s13, 0
    loop: start=0, step=1, limit=4
    $region2: #{tpu_custom_call.1} parent=1 // loop_pre_header
      _
    $region3: #{tpu_custom_call.1} parent=1 // loop_header
      %s16 = sphi 0, %s20
      %p17 = scmp.ge.s32.totalorder %s16, 4
      %s26 = sphi 0, %s28
      %s29 = sphi 0, %s26
      %s30 = sphi 0, %s29
      %s46 = sphi 0, %s30
      %s50 = sphi 0, %s50
      %s52 = sphi 0, %s50
      %s53 = sphi 0, %s52
      %s67 = sphi 0, %s53
      %s71 = sphi 0, %s71
      %s73 = sphi 0, %s71
      %s74 = sphi 0, %s73
      %s88 = sphi 0, %s74
      %s94 = sphi 0, %s96
      %s97 = sphi 0, %s94
      %s98 = sphi 0, %s97
      %s114 = sphi 0, %s98
    $region4: #{tpu_custom_call.1} parent=1 // loop_header_branch
      %19 = sbr.rel (%p17) target = $region8
    $region5: #{tpu_custom_call.1} parent=1 // loop_body
      %s21 = ssub.s32 %s16, 1
      %s22 = ssub.s32 %s16, 2
      %s23 = sadd.s32 %s16, 1
      %s24 = ssub.s32 %s16, %s23
      %p25 = scmp.eq.s32.totalorder %s24, 0
      %s27 = sadd.s32 %s26, 1
      %s28 = scalar_select %p25, %s26, %s27
      %p31 = pneg %p25
      %p32 = scmp.eq.s32.totalorder %s16, 1
      %p33 = por %p31, %p32
      %p34 = scmp.ne.s32.totalorder %s26, %s29
      %p35 = scmp.eq.s32.totalorder %s16, 0
      %p36 = por %p34, %p35
      %p37 = scmp.ne.s32.totalorder %s26, %s29
      %p38 = scmp.eq.s32.totalorder %s21, 1
      %p39 = por %p37, %p38
      %p40 = scmp.ne.s32.totalorder %s29, %s30
      %p41 = scmp.eq.s32.totalorder %s21, 0
      %p42 = por %p40, %p41
      %p43 = scmp.ne.s32.totalorder %s29, %s30
      %p44 = scmp.eq.s32.totalorder %s22, 1
      %p45 = por %p43, %p44
      %p47 = scmp.ne.s32.totalorder %s30, %s46
      %p48 = scmp.eq.s32.totalorder %s22, 0
      %p49 = por %p47, %p48
      %s51 = sadd.s32 %s50, 1
      %p54 = scmp.eq.s32.totalorder %s16, 1
      %p55 = scmp.ne.s32.totalorder %s50, %s52
      %p56 = scmp.eq.s32.totalorder %s16, 0
      %p57 = por %p55, %p56
      %p58 = scmp.ne.s32.totalorder %s50, %s52
      %p59 = scmp.eq.s32.totalorder %s21, 1
      %p60 = por %p58, %p59
      %p61 = scmp.ne.s32.totalorder %s52, %s53
      %p62 = scmp.eq.s32.totalorder %s21, 0
      %p63 = por %p61, %p62
      %p64 = scmp.ne.s32.totalorder %s52, %s53
      %p65 = scmp.eq.s32.totalorder %s22, 1
      %p66 = por %p64, %p65
      %p68 = scmp.ne.s32.totalorder %s53, %s67
      %p69 = scmp.eq.s32.totalorder %s22, 0
      %p70 = por %p68, %p69
      %s72 = sadd.s32 %s71, 1
      %p75 = scmp.eq.s32.totalorder %s16, 1
      %p76 = scmp.ne.s32.totalorder %s71, %s73
      %p77 = scmp.eq.s32.totalorder %s16, 0
      %p78 = por %p76, %p77
      %p79 = scmp.ne.s32.totalorder %s71, %s73
      %p80 = scmp.eq.s32.totalorder %s21, 1
      %p81 = por %p79, %p80
      %p82 = scmp.ne.s32.totalorder %s73, %s74
      %p83 = scmp.eq.s32.totalorder %s21, 0
      %p84 = por %p82, %p83
      %p85 = scmp.ne.s32.totalorder %s73, %s74
      %p86 = scmp.eq.s32.totalorder %s22, 1
      %p87 = por %p85, %p86
      %p89 = scmp.ne.s32.totalorder %s74, %s88
      %p90 = scmp.eq.s32.totalorder %s22, 0
      %p91 = por %p89, %p90
      %s92 = ssub.s32 %s16, %s23
      %p93 = scmp.eq.s32.totalorder %s92, 0
      %s95 = sadd.s32 %s94, 1
      %s96 = scalar_select %p93, %s94, %s95
      %p99 = pneg %p93
      %p100 = scmp.eq.s32.totalorder %s16, 1
      %p101 = por %p99, %p100
      %p102 = scmp.ne.s32.totalorder %s94, %s97
      %p103 = scmp.eq.s32.totalorder %s16, 0
      %p104 = por %p102, %p103
      %p105 = scmp.ne.s32.totalorder %s94, %s97
      %p106 = scmp.eq.s32.totalorder %s21, 1
      %p107 = por %p105, %p106
      %p108 = scmp.ne.s32.totalorder %s97, %s98
      %p109 = scmp.eq.s32.totalorder %s21, 0
      %p110 = por %p108, %p109
      %p111 = scmp.ne.s32.totalorder %s97, %s98
      %p112 = scmp.eq.s32.totalorder %s22, 1
      %p113 = por %p111, %p112
      %p115 = scmp.ne.s32.totalorder %s98, %s114
      %p116 = scmp.eq.s32.totalorder %s22, 0
      %p117 = por %p115, %p116
      %p118 = scmp.le.s32.totalorder 1, %s16
      %p119 = scmp.lt.s32.totalorder %s16, 3
      %p120 = pnand %p118, %p119
      %p121 = pneg %p120
      // Predicated region
      $region9: #{tpu_custom_call.1} parent=5 // pred_check
        _
      $region10: #{tpu_custom_call.1} parent=5 // pred_check_branch
        %123 = sbr.rel (%p120) target = $region12
      $region11: #{tpu_custom_call.1} parent=5 // pred_region
        %s124 = ssub.s32 %s16, 1
        // Predicated region
        $region13: #{tpu_custom_call.1} parent=11 // pred_check
          %p125 = pneg %p63
        $region14: #{tpu_custom_call.1} parent=11 // pred_check_branch
          %127 = sbr.rel (%p125) target = $region16
        $region15: #{tpu_custom_call.1} parent=11 // pred_region
          %129 = vsyncadd [#allocation6], 0
          %s130 = sshll.u32 %s1, 4
          %s131 = int_to_ptr.hbm [resolvable:$true] %s130
          %s132 = sshll.u32 [#allocation5], 4
          %s133 = int_to_ptr.vmem [resolvable:$true] %s132
          %138 = dma.hbm_to_vmem [thread:$0]  %s131, 512, %s133, [#allocation6], 128, 128, 8
        $region16: #{tpu_custom_call.1} parent=11 // pred_fallthru
          _
        // Predicated region
        $region17: #{tpu_custom_call.1} parent=11 // pred_check
          %p139 = pneg %p84
        $region18: #{tpu_custom_call.1} parent=11 // pred_check_branch
          %141 = sbr.rel (%p139) target = $region20
        $region19: #{tpu_custom_call.1} parent=11 // pred_region
          _
        $region20: #{tpu_custom_call.1} parent=11 // pred_fallthru
          _
      $region12: #{tpu_custom_call.1} parent=5 // pred_fallthru
        _
      %p142 = scmp.lt.s32.totalorder %s16, 2
      // Predicated region
      $region21: #{tpu_custom_call.1} parent=5 // pred_check
        %p143 = pneg %p142
      $region22: #{tpu_custom_call.1} parent=5 // pred_check_branch
        %145 = sbr.rel (%p143) target = $region24
      $region23: #{tpu_custom_call.1} parent=5 // pred_region
        // Predicated region
        $region25: #{tpu_custom_call.1} parent=23 // pred_check
          %p146 = pneg %p36
        $region26: #{tpu_custom_call.1} parent=23 // pred_check_branch
          %148 = sbr.rel (%p146) target = $region28
        $region27: #{tpu_custom_call.1} parent=23 // pred_region
          %s149 = sand.u32 %s26, 1
          %s150 = scalar_lea.sflag [#allocation3], %s149
          %s151 = sand.u32 %s26, 1
          %s152 = smul.addr %s151, 16
          %s153 = scalar_lea.vmem [#allocation2], %s152
          %s154 = smul.u32 2, %s16
          %156 = vsyncadd %s150, 0
          %s157 = smul.addr %s154, 8
          %s158 = scalar_lea.hbm %s0, %s157
          %s159 = sshll.u32 %s158, 4
          %s160 = int_to_ptr.hbm [resolvable:$true] %s159
          %s161 = sshll.u32 %s153, 4
          %s162 = int_to_ptr.vmem [resolvable:$true] %s161
          %167 = dma.hbm_to_vmem [thread:$0]  %s160, 256, %s162, %s150, 128, 128, 8
        $region28: #{tpu_custom_call.1} parent=23 // pred_fallthru
          _
      $region24: #{tpu_custom_call.1} parent=5 // pred_fallthru
        _
      %p168 = scmp.le.s32.totalorder 1, %s16
      %p169 = scmp.lt.s32.totalorder %s16, 3
      %p170 = pnand %p168, %p169
      %p171 = pneg %p170
      // Predicated region
      $region29: #{tpu_custom_call.1} parent=5 // pred_check
        _
      $region30: #{tpu_custom_call.1} parent=5 // pred_check_branch
        %173 = sbr.rel (%p170) target = $region32
      $region31: #{tpu_custom_call.1} parent=5 // pred_region
        %s174 = ssub.s32 %s16, 1
        %s175 = sand.u32 %s29, 1
        %s176 = scalar_lea.sflag [#allocation3], %s175
        %s177 = sand.u32 %s29, 1
        %s178 = smul.addr %s177, 16
        %s179 = scalar_lea.vmem [#allocation2], %s178
        // Predicated region
        $region33: #{tpu_custom_call.1} parent=31 // pred_check
          %p180 = pneg %p42
        $region34: #{tpu_custom_call.1} parent=31 // pred_check_branch
          %182 = sbr.rel (%p180) target = $region36
        $region35: #{tpu_custom_call.1} parent=31 // pred_region
          %184 = dma.done %s176, 256
        $region36: #{tpu_custom_call.1} parent=31 // pred_fallthru
          _
        // Predicated region
        $region37: #{tpu_custom_call.1} parent=31 // pred_check
          %p185 = pneg %p63
        $region38: #{tpu_custom_call.1} parent=31 // pred_check_branch
          %187 = sbr.rel (%p185) target = $region40
        $region39: #{tpu_custom_call.1} parent=31 // pred_region
          %189 = dma.done [#allocation6], 512
        $region40: #{tpu_custom_call.1} parent=31 // pred_fallthru
          _
        %s190 = sand.u32 %s29, 1
        %s191 = scalar_lea.sflag [#allocation3], %s190
        %s192 = sand.u32 %s29, 1
        %s193 = smul.addr %s192, 16
        %s194 = scalar_lea.vmem [#allocation2], %s193
        %p195 = pneg %p42
        %p196 = pneg %p39
        %p197 = pneg %p63
        %p198 = pneg %p60
        %p199 = pneg %p84
        %p200 = pneg %p81
        %p201 = pneg %p110
        %p202 = pneg %p107
        %s203 = sand.u32 %s97, 1
        %s204 = scalar_lea.sflag [#allocation4], %s203
        %s205 = sand.u32 %s97, 1
        %s206 = smul.addr %s205, 16
        %s207 = scalar_lea.vmem [#allocation7], %s206
        %s208 = smul.u32 2, %s21
        %s209 = smul.u32 2, %s21
        %v210 = vld [vmem:[%s179] sm:$0xff]
        %v211 = vld [vmem:[%s179 + $0x8] sm:$0xff]
        %v212 = vld [vmem:[#allocation5] sm:$0xff]
        %v213 = vld [vmem:[#allocation5 + $0x8] sm:$0xff]
        %v214 = vld [vmem:[#allocation5 + $0x10] sm:$0xff]
        %v215 = vld [vmem:[#allocation5 + $0x18] sm:$0xff]
        %v216 = vld [vmem:[%s2] sm:$0x1]
        %v218 = vperm.slane %v216, 0
        %vm220 = vcmask 261120
        %v222 = vsel %vm220, %v210, 0
        %v225 = vsel %vm220, %v211, 0
        %227 = vmatpush.msra.mxu0 0.0
        %228 = vmatpush.msra.mxu0 0.0
        %229 = vmatpush.msra.mxu0 0.0
        %230 = vmatpush.msra.mxu0 0.0
        %231 = vmatpush.msra.mxu0 0.0
        %232 = vmatpush.msra.mxu0 0.0
        %233 = vmatpush.msra.mxu0 0.0
        %234 = vmatpush.msra.mxu0 0.0
        %235 = vmatpush.msra.mxu0 0.0
        %236 = vmatpush.msra.mxu0 0.0
        %237 = vmatpush.msra.mxu0 0.0
        %238 = vmatpush.msra.mxu0 0.0
        %239 = vmatpush.msra.mxu0 %v215
        %240 = vmatpush.msra.mxu0 %v214
        %241 = vmatpush.msra.mxu0 %v213
        %242 = vmatpush.msra.mxu0 %v212
        %243 = vmatmul.f32.gmra.mxu0 %v222
        %v244 = vpop.f32.mrf.mxu0
        %v245 = vadd.f32 %v218, %v244
        %246 = vmatmul.f32.gmra.mxu0 %v225
        %v247 = vpop.f32.mrf.mxu0
        %v248 = vadd.f32 %v218, %v247
        %249 = vdwg.mxu0
        %250 = vst.msk [vmem:[%s207] sm:$0xff] %vm220, %v245
        %251 = vst.msk [vmem:[%s207 + $0x8] sm:$0xff] %vm220, %v248
        %s252 = sand.u32 %s97, 1
        %s253 = scalar_lea.sflag [#allocation4], %s252
        %s254 = sand.u32 %s97, 1
        %s255 = smul.addr %s254, 16
        %s256 = scalar_lea.vmem [#allocation7], %s255
        // Predicated region
        $region41: #{tpu_custom_call.1} parent=31 // pred_check
          %p257 = pneg %p107
        $region42: #{tpu_custom_call.1} parent=31 // pred_check_branch
          %259 = sbr.rel (%p257) target = $region44
        $region43: #{tpu_custom_call.1} parent=31 // pred_region
          %s260 = smul.u32 2, %s21
          %262 = vsyncadd %s253, 0
          %s263 = smul.addr %s260, 8
          %s264 = scalar_lea.hbm %s3, %s263
          %s265 = sshll.u32 %s256, 4
          %s266 = int_to_ptr.vmem [resolvable:$true] %s265
          %s267 = sshll.u32 %s264, 4
          %s268 = int_to_ptr.hbm [resolvable:$true] %s267
          %273 = dma.vmem_to_hbm [thread:$0]  %s266, 256, %s268, %s253, 128, 128, 8
        $region44: #{tpu_custom_call.1} parent=31 // pred_fallthru
          _
      $region32: #{tpu_custom_call.1} parent=5 // pred_fallthru
        _
      %p274 = scmp.le.s32.totalorder 2, %s16
      // Predicated region
      $region45: #{tpu_custom_call.1} parent=5 // pred_check
        %p275 = pneg %p274
      $region46: #{tpu_custom_call.1} parent=5 // pred_check_branch
        %277 = sbr.rel (%p275) target = $region48
      $region47: #{tpu_custom_call.1} parent=5 // pred_region
        %s278 = ssub.s32 %s16, 2
        // Predicated region
        $region49: #{tpu_custom_call.1} parent=47 // pred_check
          %p279 = pneg %p113
        $region50: #{tpu_custom_call.1} parent=47 // pred_check_branch
          %281 = sbr.rel (%p279) target = $region52
        $region51: #{tpu_custom_call.1} parent=47 // pred_region
          %s282 = sand.u32 %s98, 1
          %s283 = scalar_lea.sflag [#allocation4], %s282
          %s284 = sand.u32 %s98, 1
          %s285 = smul.addr %s284, 16
          %s286 = scalar_lea.vmem [#allocation7], %s285
          %288 = dma.done %s283, 256
        $region52: #{tpu_custom_call.1} parent=47 // pred_fallthru
          _
      $region48: #{tpu_custom_call.1} parent=5 // pred_fallthru
        _
    $region6: #{tpu_custom_call.1} parent=1 // loop_footer
      %s20 = sadd.s32 1, %s16
    $region7: #{tpu_custom_call.1} parent=1 // loop_footer_branch
      %15 = sbr.rel target = $region3
    $region8: #{tpu_custom_call.1} parent=1 // loop_exit
      _
    %289 = vsyncpa [#allocation3], 1
    %s290 = scalar_lea.sflag [#allocation3], 1
    %291 = vsyncpa %s290, 1
    %292 = vsyncpa [#allocation6], 1
    %293 = vsyncpa [#allocation4], 1
    %s294 = scalar_lea.sflag [#allocation4], 1
    %295 = vsyncpa %s294, 1

</llo_original>
